<compile_context>
chip_gen: v7x
topology: tpu7x:2x2x1
jax: 0.10.0
libtpu: 0.0.40
codegen_flags: <defaults>
</compile_context>

<pallas_src>
import jax
import jax.numpy as jnp
from jax.experimental import pallas as pl
from jax.experimental.pallas import tpu as pltpu


def _make_layernorm_kernel(eps: float, d_hid: int):
    inv_h = 1.0 / float(d_hid)
    inv_hm1 = 1.0 / float(max(d_hid - 1, 1))  # unbiased (ddof=1), guard H==1

    def kernel(z_ref, a_ref, b_ref, o_ref):
        z = z_ref[...].astype(jnp.float32)                     # (rt, H)

        # Fused one-pass row reductions (single traversal of the tile).
        s = jnp.sum(z, axis=-1, keepdims=True)                 # (rt, 1)
        ssq = jnp.sum(z * z, axis=-1, keepdims=True)           # (rt, 1)
        mu = s * jnp.float32(inv_h)
        # var = (sum(z^2) - H*mu^2) / (H-1); clamp tiny negative fp error.
        var = jnp.maximum((ssq - s * mu) * jnp.float32(inv_hm1), 0.0)
        sigma = jnp.sqrt(var)

        # One reciprocal per row (EUP) + cheap VPU multiplies, instead of
        # H divides per row. approx=False keeps exact torch-matching numerics.
        inv = pl.reciprocal(sigma + jnp.float32(eps), approx=False)

        gamma = a_ref[...].astype(jnp.float32)                 # (1, H)
        beta = b_ref[...].astype(jnp.float32)                  # (1, H)
        out = (z - mu) * inv * gamma + beta
        o_ref[...] = out.astype(o_ref.dtype)

    return kernel


def _pick_row_tile(rows: int, h: int, itemsize: int, sublane: int,
                   target_block_bytes: int = 2 << 20,
                   max_rt: int = 1024) -> int:
    """Pick a row tile sized for ~target_block_bytes of z per grid step."""
    rt = (target_block_bytes // max(h * itemsize, 1)) // sublane * sublane
    rt = max(sublane, min(rt, max_rt))
    # No point in a tile taller than the (sublane-rounded) number of rows.
    rows_rounded = ((rows + sublane - 1) // sublane) * sublane
    rt = min(rt, max(rows_rounded, sublane))
    # Keep >= 4 grid steps when there is enough work, so a v7x megacore can
    # shard the row loop over both TensorCores (neutral on v5e/v6e). Never
    # shrink below a still-large 128-row tile.
    while pl.cdiv(rows, rt) < 4 and rt > 128:
        rt = max(sublane, (rt // 2) // sublane * sublane)
    return rt


def layer_normalization(z, a_2, b_2, eps=0.001):
    """z: (B, S, H); a_2, b_2: (H,). Returns same shape/dtype as z."""
    if z.shape[1] == 1:
        # PyTorch module returns input untouched when dim-1 has size 1.
        return z

    B, S, H = z.shape
    rows = B * S
    z2 = z.reshape(rows, H)
    a2 = a_2.reshape(1, H)
    b2 = b_2.reshape(1, H)

    itemsize = jnp.dtype(z.dtype).itemsize
    sublane = {4: 8, 2: 16, 1: 32}.get(itemsize, 8)
    rt = _pick_row_tile(rows, H, itemsize, sublane)
    grid = (pl.cdiv(rows, rt),)

    # VMEM budget: double-buffered in + out blocks plus a few fp32 temporaries
    # inside the body; clamp so the scoped limit stays safe on v7x (64 MiB
    # physical per TC) while still raising v5e/v6e's low defaults.
    block_io_bytes = rt * H * itemsize
    temps_bytes = 4 * rt * H * 4
    vmem_est = 4 * block_io_bytes + temps_bytes + (2 << 20)
    vmem_limit = int(min(max(2 * vmem_est, 16 << 20), 48 << 20))

    # TODO(synk): expose input_output_aliases={0: 0} for in-place use under a
    # donating jit; left off here so the eager demo's input buffer is preserved.
    out2 = pl.pallas_call(
        _make_layernorm_kernel(eps, H),
        out_shape=jax.ShapeDtypeStruct((rows, H), z.dtype),
        grid_spec=pltpu.PrefetchScalarGridSpec(
            num_scalar_prefetch=0,
            grid=grid,
            in_specs=[
                pl.BlockSpec((rt, H), lambda i: (i, 0)),   # z rows tile
                pl.BlockSpec((1, H), lambda i: (0, 0)),    # gamma (resident)
                pl.BlockSpec((1, H), lambda i: (0, 0)),    # beta  (resident)
            ],
            out_specs=pl.BlockSpec((rt, H), lambda i: (i, 0)),
        ),
        compiler_params=pltpu.CompilerParams(
            dimension_semantics=("parallel",),
            vmem_limit_bytes=vmem_limit,
        ),
    )(z2, a2, b2)

    return out2.reshape(B, S, H)


def layer_normalization_ref(z, a_2, b_2, eps=0.001):
    """Pure-JAX reference matching the PyTorch forward exactly."""
    if z.shape[1] == 1:
        return z
    z32 = z.astype(jnp.float32)
    mu = jnp.mean(z32, axis=-1, keepdims=True)
    sigma = jnp.std(z32, axis=-1, keepdims=True, ddof=1)   # unbiased, like torch.std
    out = (z32 - mu) / (sigma + eps)
    out = out * a_2 + b_2
    return out.astype(z.dtype)


if __name__ == "__main__":
    key = jax.random.PRNGKey(0)

    B, S, H = 2, 8, 32          # batch=2, seq=8, hidden=32
    z = jax.random.normal(key, (B, S, H), dtype=jnp.float32)

    # Parameters initialized exactly as in the module's __init__:
    a_2 = jnp.ones((H,), dtype=jnp.float32)    # gamma
    b_2 = jnp.zeros((H,), dtype=jnp.float32)   # beta

    out = layer_normalization(z, a_2, b_2, eps=0.001)
    out = jax.block_until_ready(out)

    ref = layer_normalization_ref(z, a_2, b_2, eps=0.001)
    assert out.shape == z.shape and out.dtype == z.dtype
    assert jnp.allclose(out, ref, atol=1e-5, rtol=1e-4), "mismatch vs reference"

    print("KERNEL_OK")
</pallas_src>

<mosaic_0001>
module attributes {stable_mosaic.version = 11 : i64} {
  func.func @kernel(%arg0: i32, %arg1: memref<16x32xf32, #tpu.memory_space<vmem>>, %arg2: memref<1x32xf32, #tpu.memory_space<vmem>>, %arg3: memref<1x32xf32, #tpu.memory_space<vmem>>, %arg4: memref<16x32xf32, #tpu.memory_space<vmem>>) attributes {dimension_semantics = [#tpu.dimension_semantics<parallel>], iteration_bounds = array<i64: 1>, scalar_prefetch = 0 : i64, scratch_operands = 0 : i64, tpu.core_type = #tpu.core_type<tc>, window_params = [{transform_indices = @transform_0, window_bounds = array<i64: 16, 32>}, {pipeline_mode = #tpu.pipeline_mode<synchronous>, transform_indices = @transform_1, window_bounds = array<i64: 1, 32>}, {pipeline_mode = #tpu.pipeline_mode<synchronous>, transform_indices = @transform_2, window_bounds = array<i64: 1, 32>}, {transform_indices = @transform_3, window_bounds = array<i64: 16, 32>}]} {
    %c0 = arith.constant 0 : index
    %c0_0 = arith.constant 0 : index
    %0 = vector.load %arg1[%c0, %c0_0] : memref<16x32xf32, #tpu.memory_space<vmem>>, vector<16x32xf32>
    %cst = arith.constant dense<0.000000e+00> : vector<16xf32>
    %1 = vector.multi_reduction <add>, %0, %cst [1] : vector<16x32xf32> to vector<16xf32>
    %2 = vector.shape_cast %1 : vector<16xf32> to vector<16x1xf32>
    %3 = arith.mulf %0, %0 : vector<16x32xf32>
    %cst_1 = arith.constant dense<0.000000e+00> : vector<16xf32>
    %4 = vector.multi_reduction <add>, %3, %cst_1 [1] : vector<16x32xf32> to vector<16xf32>
    %5 = vector.shape_cast %4 : vector<16xf32> to vector<16x1xf32>
    %cst_2 = arith.constant 3.125000e-02 : f32
    %6 = vector.broadcast %cst_2 : f32 to vector<16x1xf32>
    %7 = arith.mulf %2, %6 : vector<16x1xf32>
    %8 = arith.mulf %2, %7 : vector<16x1xf32>
    %9 = arith.subf %5, %8 : vector<16x1xf32>
    %cst_3 = arith.constant 0.0322580636 : f32
    %10 = vector.broadcast %cst_3 : f32 to vector<16x1xf32>
    %11 = arith.mulf %9, %10 : vector<16x1xf32>
    %cst_4 = arith.constant 0.000000e+00 : f32
    %12 = vector.broadcast %cst_4 : f32 to vector<16x1xf32>
    %13 = arith.maximumf %11, %12 : vector<16x1xf32>
    %14 = math.sqrt %13 : vector<16x1xf32>
    %cst_5 = arith.constant 1.000000e-03 : f32
    %15 = vector.broadcast %cst_5 : f32 to vector<16x1xf32>
    %16 = arith.addf %14, %15 : vector<16x1xf32>
    %17 = tpu.reciprocal %16 : vector<16x1xf32> -> vector<16x1xf32>
    %c0_6 = arith.constant 0 : index
    %c0_7 = arith.constant 0 : index
    %18 = vector.load %arg2[%c0_6, %c0_7] : memref<1x32xf32, #tpu.memory_space<vmem>>, vector<1x32xf32>
    %c0_8 = arith.constant 0 : index
    %c0_9 = arith.constant 0 : index
    %19 = vector.load %arg3[%c0_8, %c0_9] : memref<1x32xf32, #tpu.memory_space<vmem>>, vector<1x32xf32>
    %20 = vector.broadcast %7 : vector<16x1xf32> to vector<16x32xf32>
    %21 = arith.subf %0, %20 : vector<16x32xf32>
    %22 = vector.broadcast %17 : vector<16x1xf32> to vector<16x32xf32>
    %23 = arith.mulf %21, %22 : vector<16x32xf32>
    %24 = vector.broadcast %18 : vector<1x32xf32> to vector<16x32xf32>
    %25 = arith.mulf %23, %24 : vector<16x32xf32>
    %26 = vector.broadcast %19 : vector<1x32xf32> to vector<16x32xf32>
    %27 = arith.addf %25, %26 : vector<16x32xf32>
    %c0_10 = arith.constant 0 : index
    %c0_11 = arith.constant 0 : index
    %28 = vector.load %arg4[%c0_10, %c0_11] : memref<16x32xf32, #tpu.memory_space<vmem>>, vector<16x32xf32>
    tpu.vector_store %arg4[%c0_10, %c0_11], %27 {strides = array<i32>} : memref<16x32xf32, #tpu.memory_space<vmem>>, vector<16x32xf32>,
    return
  }
  func.func @transform_0(%arg0: i32) -> (i32, i32) {
    %c0_i32 = arith.constant 0 : i32
    %c0_i32_0 = arith.constant 0 : i32
    return %arg0, %c0_i32 : i32, i32
  }
  func.func @transform_1(%arg0: i32) -> (i32, i32) {
    %c0_i32 = arith.constant 0 : i32
    %c0_i32_0 = arith.constant 0 : i32
    %c0_i32_1 = arith.constant 0 : i32
    return %c0_i32, %c0_i32_0 : i32, i32
  }
  func.func @transform_2(%arg0: i32) -> (i32, i32) {
    %c0_i32 = arith.constant 0 : i32
    %c0_i32_0 = arith.constant 0 : i32
    %c0_i32_1 = arith.constant 0 : i32
    return %c0_i32, %c0_i32_0 : i32, i32
  }
  func.func @transform_3(%arg0: i32) -> (i32, i32) {
    %c0_i32 = arith.constant 0 : i32
    %c0_i32_0 = arith.constant 0 : i32
    return %arg0, %c0_i32 : i32, i32
  }
}

</mosaic_0001>

<llo_original>
// kernel: tpu_custom_call.1
$region0: #{tpu_custom_call.1}
  #allocation0 [shape = 'u32[]', space=smem, size = 0x4, offset = 0x4, fixed_abs, tag = 'smem constant byte address 0x4 - core index']
  #allocation1 [shape = 'u32[144,128]{1,0:T(1,128)}', space=vmem, size = 0x12000, scoped, tag = 'internal scratch']
  %s0 = inlined_call_operand.hbm [shape: f32[16,32], index: 0, kind: input, shape index: {}]
  %s1 = inlined_call_operand.vmem [shape: f32[1,32], index: 1, kind: input, shape index: {}]
  %s2 = inlined_call_operand.vmem [shape: f32[1,32], index: 2, kind: input, shape index: {}]
  %s3 = inlined_call_operand.hbm [shape: f32[16,32], index: 3, kind: output, shape index: {}]
  %s4 = sld [smem:[#allocation0]]
  $region26: #{tpu_custom_call.1} parent=0
    _
  %s6 = ssub.s32 1, %s4
  %s7 = scalar_select 0, %s6, %s4
  $region1: #{tpu_custom_call.1} parent=0
    #allocation2 [shape = 'u8[8192]{0}', space=vmem, size = 0x2000, scoped, tag = 'input window, operand 0, single buffered']
    #allocation3 [shape = 's32[1]{0}', space=sflag, size = 0x4, scoped, tag = 'scoped memory for tpu_custom_call.1']
    #allocation4 [shape = 's32[1]{0}', space=sflag, size = 0x4, scoped, tag = 'scoped memory for tpu_custom_call.1']
    #allocation5 [shape = 'u8[8192]{0}', space=vmem, size = 0x2000, scoped, tag = 'output window, operand 0, single buffered']
    %8 = vsyncpa [#allocation3], 0
    %9 = vsyncpa [#allocation4], 0
    // Predicated region
    $region2: #{tpu_custom_call.1} parent=1 // pred_check
      _
    $region3: #{tpu_custom_call.1} parent=1 // pred_check_branch
      %11 = sbr.rel (0) target = $region5
    $region4: #{tpu_custom_call.1} parent=1 // pred_region
      %s13 = ssub.s32 256, 256
      %14 = vsyncadd [#allocation3], %s13
      %s15 = sshll.u32 [#allocation2], 4
      %s16 = int_to_ptr.vmem [resolvable:$true] %s15
      %21 = dma.hbm_to_vmem [thread:$0]  %s0, 256, %s16, [#allocation3], 128, 128, 8
    $region5: #{tpu_custom_call.1} parent=1 // pred_fallthru
      _
    // Predicated region
    $region6: #{tpu_custom_call.1} parent=1 // pred_check
      _
    $region7: #{tpu_custom_call.1} parent=1 // pred_check_branch
      %23 = sbr.rel (0) target = $region9
    $region8: #{tpu_custom_call.1} parent=1 // pred_region
      _
    $region9: #{tpu_custom_call.1} parent=1 // pred_fallthru
      _
    // Predicated region
    $region10: #{tpu_custom_call.1} parent=1 // pred_check
      _
    $region11: #{tpu_custom_call.1} parent=1 // pred_check_branch
      %25 = sbr.rel (0) target = $region13
    $region12: #{tpu_custom_call.1} parent=1 // pred_region
      _
    $region13: #{tpu_custom_call.1} parent=1 // pred_fallthru
      _
    // Predicated region
    $region14: #{tpu_custom_call.1} parent=1 // pred_check
      _
    $region15: #{tpu_custom_call.1} parent=1 // pred_check_branch
      %27 = sbr.rel (0) target = $region17
    $region16: #{tpu_custom_call.1} parent=1 // pred_region
      %28 = dma.done [#allocation3], 256
    $region17: #{tpu_custom_call.1} parent=1 // pred_fallthru
      _
    %v29 = vld [vmem:[#allocation2] sm:$0xff]
    %v30 = vld [vmem:[#allocation2 + $0x8] sm:$0xff]
    %vm31 = vcmask 261120
    %v32 = vsel %vm31, %v29, 0.0
    %33 = vadd.xlane.f32.xlu0 %v32
    %v34 = vpop.xlane.xlu0 %33
    %v35 = vsel %vm31, %v30, 0.0
    %36 = vadd.xlane.f32.xlu0 %v35
    %v37 = vpop.xlane.xlu0 %36
    %v38 = vmul.f32 %v29, %v29
    %v39 = vmul.f32 %v30, %v30
    %v40 = vsel %vm31, %v38, 0.0
    %41 = vadd.xlane.f32.xlu0 %v40
    %v42 = vpop.xlane.xlu0 %41
    %v43 = vsel %vm31, %v39, 0.0
    %44 = vadd.xlane.f32.xlu0 %v43
    %v45 = vpop.xlane.xlu0 %44
    %v46 = vmul.f32 %v34, 0.03125
    %v47 = vmul.f32 %v37, 0.03125
    %v48 = vmul.f32 %v34, %v46
    %v49 = vmul.f32 %v37, %v47
    %v50 = vsub.f32 %v42, %v48
    %v51 = vsub.f32 %v45, %v49
    %v52 = vmul.f32 %v50, 0.032258064
    %v53 = vmul.f32 %v51, 0.032258064
    %v54 = vmax.f32 %v52, 0.0
    %v55 = vmax.f32 %v53, 0.0
    %v56 = vrsqrt.pop %v54
    %v57 = vmul.f32 %v54, %v56
    %vm58 = vcmp.eq.f32.partialorder %v54, inf
    %v59 = vsel %vm58, %v54, %v57
    %vm60 = vcmp.eq.f32.partialorder %v54, 0.0
    %v61 = vand.u32 %v54, 2147483648
    %v62 = vsel %vm60, %v61, %v59
    %v63 = vrsqrt.pop %v55
    %v64 = vmul.f32 %v55, %v63
    %vm65 = vcmp.eq.f32.partialorder %v55, inf
    %v66 = vsel %vm65, %v55, %v64
    %vm67 = vcmp.eq.f32.partialorder %v55, 0.0
    %v68 = vand.u32 %v55, 2147483648
    %v69 = vsel %vm67, %v68, %v66
    %v70 = vadd.f32 %v62, 0.001
    %v71 = vadd.f32 %v69, 0.001
    %v72 = vrcp.pop %v70
    %v73 = vrcp.pop %v71
    %v74 = vld [vmem:[%s1] sm:$0x1]
    %v75 = vld [vmem:[%s2] sm:$0x1]
    %v76 = vsub.f32 %v29, %v46
    %v77 = vsub.f32 %v30, %v47
    %v78 = vmul.f32 %v76, %v72
    %v79 = vmul.f32 %v77, %v73
    %v81 = vlaneseq
    %v82 = vshrl.u32 %v81, 7
    %v83 = vsub.s32 0, %v82
    %v84 = vrot.slane %v74, %v83
    %v86 = vmul.f32 %v78, %v84
    %v87 = vmul.f32 %v79, %v84
    %v89 = vlaneseq
    %v90 = vshrl.u32 %v89, 7
    %v91 = vsub.s32 0, %v90
    %v92 = vrot.slane %v75, %v91
    %v94 = vadd.f32 %v86, %v92
    %v95 = vadd.f32 %v87, %v92
    %96 = vst.msk [vmem:[#allocation5] sm:$0xff] %vm31, %v94
    %97 = vst.msk [vmem:[#allocation5 + $0x8] sm:$0xff] %vm31, %v95
    // Predicated region
    $region18: #{tpu_custom_call.1} parent=1 // pred_check
      _
    $region19: #{tpu_custom_call.1} parent=1 // pred_check_branch
      %99 = sbr.rel (0) target = $region21
    $region20: #{tpu_custom_call.1} parent=1 // pred_region
      %s101 = ssub.s32 256, 256
      %102 = vsyncadd [#allocation4], %s101
      %s103 = sshll.u32 [#allocation5], 4
      %s104 = int_to_ptr.vmem [resolvable:$true] %s103
      %109 = dma.vmem_to_hbm [thread:$0]  %s104, 256, %s3, [#allocation4], 128, 128, 8
    $region21: #{tpu_custom_call.1} parent=1 // pred_fallthru
      _
    // Predicated region
    $region22: #{tpu_custom_call.1} parent=1 // pred_check
      _
    $region23: #{tpu_custom_call.1} parent=1 // pred_check_branch
      %111 = sbr.rel (0) target = $region25
    $region24: #{tpu_custom_call.1} parent=1 // pred_region
      %112 = dma.done [#allocation4], 256
    $region25: #{tpu_custom_call.1} parent=1 // pred_fallthru
      _
    %113 = vsyncpa [#allocation3], 1
    %114 = vsyncpa [#allocation4], 1

</llo_original>
